<compile_context>
chip_gen: v6e
topology: v6e:2x2x1
jax: 0.10.0
libtpu: 0.0.40
codegen_flags: <defaults>
</compile_context>

<pallas_src>
import functools

import jax
import jax.numpy as jnp
from jax.experimental import pallas as pl
from jax.experimental.pallas import tpu as pltpu


def _round_up(x: int, m: int) -> int:
    return ((x + m - 1) // m) * m


def _cdiv(a: int, b: int) -> int:
    return (a + b - 1) // b


def _num_tensorcores() -> int:
    """Best-effort TensorCore count per chip (v7x = 2, else 1)."""
    try:
        kind = jax.devices()[0].device_kind.lower()
        if "v7" in kind:
            return 2
    except Exception:
        pass
    return 1


def _vmem_limit_bytes() -> int:
    """Generation-aware scoped-VMEM limit: headroom below physical capacity."""
    cap = None
    try:
        cap = getattr(pltpu.get_tpu_info(), "vmem_capacity_bytes", None)
    except Exception:
        cap = None
    if cap is None:
        try:
            kind = jax.devices()[0].device_kind.lower()
        except Exception:
            kind = ""
        cap = (64 if "v7" in kind else 128) * 1024 * 1024
    # ~8 MiB headroom for Mosaic-internal scratch; never ask for more than 100 MiB.
    return int(min(cap - 8 * 1024 * 1024, 100 * 1024 * 1024))


def _cls_head_kernel(cls_ref, wd_ref, bd_ref, g_ref, beta_ref, wc_ref, bc_ref,
                     out_ref, *, n_dense: int, use_layer_norm: bool,
                     eps: float = 1e-5):
    """Fused CLS head on one batch tile.

    cls_ref : [TILE_B, H]        pooled CLS activations (sliced in wrapper)
    wd_ref  : [n_dense, H, H]    stacked dense weights (x @ W convention)
    bd_ref  : [n_dense, 1, H]    stacked dense biases
    g_ref   : [n_dense, 1, H]    stacked LayerNorm gammas
    beta_ref: [n_dense, 1, H]    stacked LayerNorm betas
    wc_ref  : [H, C_pad]         classifier weight (lane-padded)
    bc_ref  : [1, C_pad]         classifier bias   (lane-padded)
    out_ref : [TILE_B, C_pad]    logits (lane-dense store)
    """
    h = cls_ref[...].astype(jnp.float32)                  # [TILE_B, H]

    for i in range(n_dense):                               # static unrolled loop
        w = wd_ref[i]                                      # [H, H]
        # cast activations to the weight dtype (no-op for f32, bf16 MXU path
        # when weights are bf16); accumulate in f32.
        h = jnp.dot(h.astype(w.dtype), w,
                    preferred_element_type=jnp.float32) + bd_ref[i]
        if use_layer_norm:
            # Single-pass statistics: var = E[x^2] - E[x]^2 (clamped).
            mean = jnp.mean(h, axis=-1, keepdims=True)
            mean_sq = jnp.mean(h * h, axis=-1, keepdims=True)
            var = jnp.maximum(mean_sq - mean * mean, 0.0)
            h = (h - mean) * jax.lax.rsqrt(var + eps)
            h = h * g_ref[i] + beta_ref[i]
        h = jnp.maximum(h, 0.0)                            # ReLU
        # dropout p=0.0 -> identity (eval mode); nothing to do.

    wc = wc_ref[...]                                       # [H, C_pad]
    logits = jnp.dot(h.astype(wc.dtype), wc,
                     preferred_element_type=jnp.float32)
    out_ref[...] = (logits + bc_ref[...]).astype(out_ref.dtype)


def prepare_params(params, *, weight_dtype=None):
    """One-time parameter prep (call outside jit / once per model):

      * lane-pad the classifier weight/bias to a 128 multiple,
      * optionally cast the matmul weights to `weight_dtype` (e.g. bfloat16).

    Returns (prepared_params, n_classes). Doing this once avoids the per-call
    astype/pad HBM round-trip the previous version paid on every forward.
    """
    wc, bc = params["wc"], params["bc"]
    C = wc.shape[-1]
    C_pad = _round_up(C, 128)
    if C_pad != C:
        wc = jnp.pad(wc, ((0, 0), (0, C_pad - C)))
        bc = jnp.pad(bc, ((0, 0), (0, C_pad - C)))
    wd = params["wd"]
    if weight_dtype is not None:
        wd = wd.astype(weight_dtype)
        wc = wc.astype(weight_dtype)
    out = dict(params)
    out["wd"], out["wc"], out["bc"] = wd, wc, bc
    return out, C


def cls_head_forward(last_hidden_state, params, *, n_dense: int,
                     use_layer_norm: bool, n_classes=None, labels=None,
                     weight_dtype=None, tile_b: int = 256):
    """Wrapper mirroring CLSHead.forward (pool_type='cls').

    Preferred usage: params, n_classes = prepare_params(raw_params, ...), then
    pass both here. If n_classes is None, params are treated as unprepared and
    padding / casting happens per call (convenience path).
    """
    B, S, H = last_hidden_state.shape
    wd, bd = params["wd"], params["bd"]
    gamma, beta = params["gamma"], params["beta"]
    wc, bc = params["wc"], params["bc"]

    if n_classes is None:
        # Convenience path (unprepared params): pad/cast per call.
        C = wc.shape[-1]
        C_pad = _round_up(C, 128)
        if C_pad != C:
            wc = jnp.pad(wc, ((0, 0), (0, C_pad - C)))
            bc = jnp.pad(bc, ((0, 0), (0, C_pad - C)))
        if weight_dtype is not None:
            wd = wd.astype(weight_dtype)
            wc = wc.astype(weight_dtype)
    else:
        C = int(n_classes)
    C_pad = wc.shape[-1]

    # --- cls pooling in the wrapper: contiguous [B, H] slab for the kernel ---
    # TODO(synk): optionally DMA the CLS row straight from [B, S, H] with a
    # (tile_b, Squeezed, H) BlockSpec to skip this extra HBM round-trip.
    cls = last_hidden_state[:, 0, :]

    # --- batch tiling: minimal padding, dtype-aware sublane alignment, and
    #     >=2 grid steps on v7x (2 TensorCores) when the batch allows it ------
    align = 16 if jnp.dtype(cls.dtype).itemsize == 2 else 8
    B_aligned = _round_up(B, align)
    n_cores = _num_tensorcores()
    n_steps = _cdiv(B_aligned, max(_round_up(tile_b, align), align))
    if B_aligned >= n_cores * align:
        n_steps = max(n_steps, n_cores)
    tile_b_eff = _round_up(_cdiv(B_aligned, n_steps), align)
    n_steps = _cdiv(B_aligned, tile_b_eff)
    B_pad = n_steps * tile_b_eff
    if B_pad != B:
        cls = jnp.pad(cls, ((0, B_pad - B), (0, 0)))

    kernel = functools.partial(_cls_head_kernel, n_dense=n_dense,
                               use_layer_norm=use_layer_norm)

    # Weights/params use a constant block index and a single buffer: they are
    # DMA'd once and stay VMEM-resident across batch tiles without paying the
    # default 2x double-buffer footprint.
    resident = functools.partial(pl.BlockSpec, pipeline_mode=pl.Buffered(1))

    logits_pad = pl.pallas_call(
        kernel,
        out_shape=jax.ShapeDtypeStruct((B_pad, C_pad), jnp.float32),
        grid=(n_steps,),
        in_specs=[
            # activation tile walks the batch axis (double-buffered as usual)
            pl.BlockSpec((tile_b_eff, H), lambda i: (i, 0)),
            resident((n_dense, H, H), lambda i: (0, 0, 0)),
            resident((n_dense, 1, H), lambda i: (0, 0, 0)),
            resident((n_dense, 1, H), lambda i: (0, 0, 0)),
            resident((n_dense, 1, H), lambda i: (0, 0, 0)),
            resident((H, C_pad), lambda i: (0, 0)),
            resident((1, C_pad), lambda i: (0, 0)),
        ],
        out_specs=pl.BlockSpec((tile_b_eff, C_pad), lambda i: (i, 0)),
        compiler_params=pltpu.CompilerParams(
            dimension_semantics=("parallel",),
            vmem_limit_bytes=_vmem_limit_bytes(),
        ),
    )(cls, wd, bd, gamma, beta, wc, bc)

    logits = logits_pad[:B, :C]

    loss = None
    if labels is not None:
        # CrossEntropyLoss (mean reduction) — tiny glue reduction kept in JAX.
        logp = jax.nn.log_softmax(logits, axis=-1)
        loss = -jnp.mean(jnp.take_along_axis(logp, labels[:, None], axis=-1))
    return logits, loss


def init_params(key, hidden_size: int, n_classes: int, n_dense: int):
    """Deterministic synthetic parameters (shapes match nn.Linear/LayerNorm)."""
    ks = jax.random.split(key, 4)
    bound_h = 1.0 / jnp.sqrt(hidden_size)
    wd = jax.random.uniform(ks[0], (n_dense, hidden_size, hidden_size),
                            jnp.float32, -bound_h, bound_h)
    bd = jax.random.uniform(ks[1], (n_dense, 1, hidden_size),
                            jnp.float32, -bound_h, bound_h)
    gamma = jnp.ones((n_dense, 1, hidden_size), jnp.float32)
    beta = jnp.zeros((n_dense, 1, hidden_size), jnp.float32)
    wc = jax.random.uniform(ks[2], (hidden_size, n_classes),
                            jnp.float32, -bound_h, bound_h)
    bc = jax.random.uniform(ks[3], (1, n_classes),
                            jnp.float32, -bound_h, bound_h)
    return {"wd": wd, "bd": bd, "gamma": gamma, "beta": beta,
            "wc": wc, "bc": bc}


def reference_forward(last_hidden_state, params, *, n_dense, use_layer_norm,
                      eps=1e-5, weight_dtype=None):
    """Pure-JAX reference for correctness check (optionally bf16 weights)."""
    def mm(a, w):
        if weight_dtype is not None:
            a = a.astype(weight_dtype)
            w = w.astype(weight_dtype)
        return jnp.dot(a, w, preferred_element_type=jnp.float32)

    h = last_hidden_state[:, 0, :]
    for i in range(n_dense):
        h = mm(h, params["wd"][i]) + params["bd"][i]
        if use_layer_norm:
            mean = jnp.mean(h, -1, keepdims=True)
            var = jnp.mean((h - mean) ** 2, -1, keepdims=True)
            h = (h - mean) / jnp.sqrt(var + eps)
            h = h * params["gamma"][i] + params["beta"][i]
        h = jnp.maximum(h, 0.0)
    return mm(h, params["wc"]) + params["bc"]


if __name__ == "__main__":
    B, S, H, C = 2, 8, 32, 4
    N_DENSE = 2
    USE_LAYER_NORM = True

    key = jax.random.PRNGKey(0)
    k_x, k_p, k_l, k_x2 = jax.random.split(key, 4)
    last_hidden_state = jax.random.normal(k_x, (B, S, H), jnp.float32)
    labels = jax.random.randint(k_l, (B,), 0, C)
    raw_params = init_params(k_p, H, C, N_DENSE)

    # --- f32 weights, prepared once: exact semantics match to PyTorch module ---
    params_f32, n_classes = prepare_params(raw_params)
    logits, loss = cls_head_forward(last_hidden_state, params_f32,
                                    n_dense=N_DENSE,
                                    use_layer_norm=USE_LAYER_NORM,
                                    n_classes=n_classes, labels=labels)
    logits = jax.block_until_ready(logits)
    loss = jax.block_until_ready(loss)
    ref = reference_forward(last_hidden_state, raw_params, n_dense=N_DENSE,
                            use_layer_norm=USE_LAYER_NORM)
    assert logits.shape == (B, C)
    assert jnp.allclose(logits, ref, atol=1e-4, rtol=1e-4)

    # --- bf16-stored weights (one-time cast), f32 accumulation ---
    params_bf16, _ = prepare_params(raw_params, weight_dtype=jnp.bfloat16)
    logits_bf16, _ = cls_head_forward(last_hidden_state, params_bf16,
                                      n_dense=N_DENSE,
                                      use_layer_norm=USE_LAYER_NORM,
                                      n_classes=n_classes)
    logits_bf16 = jax.block_until_ready(logits_bf16)
    ref_bf16 = reference_forward(last_hidden_state, raw_params,
                                 n_dense=N_DENSE,
                                 use_layer_norm=USE_LAYER_NORM,
                                 weight_dtype=jnp.bfloat16)
    assert jnp.allclose(logits_bf16, ref_bf16, atol=1e-2, rtol=1e-2)

    # --- multi-tile batch path (grid > 1, minimal tail padding, resident wts) ---
    B2 = 20
    x2 = jax.random.normal(k_x2, (B2, S, H), jnp.float32)
    logits2, _ = cls_head_forward(x2, params_f32, n_dense=N_DENSE,
                                  use_layer_norm=USE_LAYER_NORM,
                                  n_classes=n_classes, tile_b=8)
    logits2 = jax.block_until_ready(logits2)
    ref2 = reference_forward(x2, raw_params, n_dense=N_DENSE,
                             use_layer_norm=USE_LAYER_NORM)
    assert logits2.shape == (B2, C)
    assert jnp.allclose(logits2, ref2, atol=1e-4, rtol=1e-4)

    # --- unprepared-params convenience path still works ---
    logits3, _ = cls_head_forward(last_hidden_state, raw_params,
                                  n_dense=N_DENSE,
                                  use_layer_norm=USE_LAYER_NORM)
    logits3 = jax.block_until_ready(logits3)
    assert jnp.allclose(logits3, ref, atol=1e-4, rtol=1e-4)

    print("KERNEL_OK")
</pallas_src>

<mosaic_0001>
module attributes {stable_mosaic.version = 11 : i64} {
  func.func @_cls_head_kernel(%arg0: i32, %arg1: memref<8x32xf32, #tpu.memory_space<vmem>>, %arg2: memref<2x32x32xf32, #tpu.memory_space<vmem>>, %arg3: memref<2x1x32xf32, #tpu.memory_space<vmem>>, %arg4: memref<2x1x32xf32, #tpu.memory_space<vmem>>, %arg5: memref<2x1x32xf32, #tpu.memory_space<vmem>>, %arg6: memref<32x128xf32, #tpu.memory_space<vmem>>, %arg7: memref<1x128xf32, #tpu.memory_space<vmem>>, %arg8: memref<8x128xf32, #tpu.memory_space<vmem>>) attributes {dimension_semantics = [#tpu.dimension_semantics<parallel>], iteration_bounds = array<i64: 1>, scalar_prefetch = 0 : i64, scratch_operands = 0 : i64, tpu.core_type = #tpu.core_type<tc>, window_params = [{transform_indices = @transform_0, window_bounds = array<i64: 8, 32>}, {pipeline_mode = #tpu.pipeline_mode<synchronous>, transform_indices = @transform_1, window_bounds = array<i64: 2, 32, 32>}, {pipeline_mode = #tpu.pipeline_mode<synchronous>, transform_indices = @transform_2, window_bounds = array<i64: 2, 1, 32>}, {pipeline_mode = #tpu.pipeline_mode<synchronous>, transform_indices = @transform_3, window_bounds = array<i64: 2, 1, 32>}, {pipeline_mode = #tpu.pipeline_mode<synchronous>, transform_indices = @transform_4, window_bounds = array<i64: 2, 1, 32>}, {pipeline_mode = #tpu.pipeline_mode<synchronous>, transform_indices = @transform_5, window_bounds = array<i64: 32, 128>}, {pipeline_mode = #tpu.pipeline_mode<synchronous>, transform_indices = @transform_6, window_bounds = array<i64: 1, 128>}, {transform_indices = @transform_7, window_bounds = array<i64: 8, 128>}]} {
    %c0 = arith.constant 0 : index
    %c0_0 = arith.constant 0 : index
    %0 = vector.load %arg1[%c0, %c0_0] : memref<8x32xf32, #tpu.memory_space<vmem>>, vector<8x32xf32>
    %c0_1 = arith.constant 0 : index
    %c0_2 = arith.constant 0 : index
    %c0_3 = arith.constant 0 : index
    %1 = vector.load %arg2[%c0_1, %c0_2, %c0_3] : memref<2x32x32xf32, #tpu.memory_space<vmem>>, vector<1x32x32xf32>
    %2 = vector.shape_cast %1 : vector<1x32x32xf32> to vector<32x32xf32>
    %cst = arith.constant dense<0.000000e+00> : vector<8x32xf32>
    %3 = tpu.matmul %0, %2, %cst {dimension_numbers = #tpu.dot_dimension_numbers<[1], [0], [0], [1], [0, 0, 1, 1], [], []>} : vector<8x32xf32>, vector<32x32xf32>, vector<8x32xf32> -> vector<8x32xf32>
    %c0_4 = arith.constant 0 : index
    %c0_5 = arith.constant 0 : index
    %c0_6 = arith.constant 0 : index
    %4 = vector.load %arg3[%c0_4, %c0_5, %c0_6] : memref<2x1x32xf32, #tpu.memory_space<vmem>>, vector<1x1x32xf32>
    %5 = vector.shape_cast %4 : vector<1x1x32xf32> to vector<1x32xf32>
    %6 = vector.broadcast %5 : vector<1x32xf32> to vector<8x32xf32>
    %7 = arith.addf %3, %6 : vector<8x32xf32>
    %cst_7 = arith.constant dense<0.000000e+00> : vector<8xf32>
    %8 = vector.multi_reduction <add>, %7, %cst_7 [1] : vector<8x32xf32> to vector<8xf32>
    %9 = vector.shape_cast %8 : vector<8xf32> to vector<8x1xf32>
    %cst_8 = arith.constant 3.200000e+01 : f32
    %10 = vector.broadcast %cst_8 : f32 to vector<8x1xf32>
    %11 = arith.divf %9, %10 : vector<8x1xf32>
    %12 = arith.mulf %7, %7 : vector<8x32xf32>
    %cst_9 = arith.constant dense<0.000000e+00> : vector<8xf32>
    %13 = vector.multi_reduction <add>, %12, %cst_9 [1] : vector<8x32xf32> to vector<8xf32>
    %14 = vector.shape_cast %13 : vector<8xf32> to vector<8x1xf32>
    %cst_10 = arith.constant 3.200000e+01 : f32
    %15 = vector.broadcast %cst_10 : f32 to vector<8x1xf32>
    %16 = arith.divf %14, %15 : vector<8x1xf32>
    %17 = arith.mulf %11, %11 : vector<8x1xf32>
    %18 = arith.subf %16, %17 : vector<8x1xf32>
    %cst_11 = arith.constant 0.000000e+00 : f32
    %19 = vector.broadcast %cst_11 : f32 to vector<8x1xf32>
    %20 = arith.maximumf %18, %19 : vector<8x1xf32>
    %21 = vector.broadcast %11 : vector<8x1xf32> to vector<8x32xf32>
    %22 = arith.subf %7, %21 : vector<8x32xf32>
    %cst_12 = arith.constant 9.99999974E-6 : f32
    %23 = vector.broadcast %cst_12 : f32 to vector<8x1xf32>
    %24 = arith.addf %20, %23 : vector<8x1xf32>
    %25 = math.rsqrt %24 : vector<8x1xf32>
    %26 = vector.broadcast %25 : vector<8x1xf32> to vector<8x32xf32>
    %27 = arith.mulf %22, %26 : vector<8x32xf32>
    %c0_13 = arith.constant 0 : index
    %c0_14 = arith.constant 0 : index
    %c0_15 = arith.constant 0 : index
    %28 = vector.load %arg4[%c0_13, %c0_14, %c0_15] : memref<2x1x32xf32, #tpu.memory_space<vmem>>, vector<1x1x32xf32>
    %29 = vector.shape_cast %28 : vector<1x1x32xf32> to vector<1x32xf32>
    %30 = vector.broadcast %29 : vector<1x32xf32> to vector<8x32xf32>
    %31 = arith.mulf %27, %30 : vector<8x32xf32>
    %c0_16 = arith.constant 0 : index
    %c0_17 = arith.constant 0 : index
    %c0_18 = arith.constant 0 : index
    %32 = vector.load %arg5[%c0_16, %c0_17, %c0_18] : memref<2x1x32xf32, #tpu.memory_space<vmem>>, vector<1x1x32xf32>
    %33 = vector.shape_cast %32 : vector<1x1x32xf32> to vector<1x32xf32>
    %34 = vector.broadcast %33 : vector<1x32xf32> to vector<8x32xf32>
    %35 = arith.addf %31, %34 : vector<8x32xf32>
    %cst_19 = arith.constant 0.000000e+00 : f32
    %36 = vector.broadcast %cst_19 : f32 to vector<8x32xf32>
    %37 = arith.maximumf %35, %36 : vector<8x32xf32>
    %c1 = arith.constant 1 : index
    %c0_20 = arith.constant 0 : index
    %c0_21 = arith.constant 0 : index
    %38 = vector.load %arg2[%c1, %c0_20, %c0_21] : memref<2x32x32xf32, #tpu.memory_space<vmem>>, vector<1x32x32xf32>
    %39 = vector.shape_cast %38 : vector<1x32x32xf32> to vector<32x32xf32>
    %cst_22 = arith.constant dense<0.000000e+00> : vector<8x32xf32>
    %40 = tpu.matmul %37, %39, %cst_22 {dimension_numbers = #tpu.dot_dimension_numbers<[1], [0], [0], [1], [0, 0, 1, 1], [], []>} : vector<8x32xf32>, vector<32x32xf32>, vector<8x32xf32> -> vector<8x32xf32>
    %c1_23 = arith.constant 1 : index
    %c0_24 = arith.constant 0 : index
    %c0_25 = arith.constant 0 : index
    %41 = vector.load %arg3[%c1_23, %c0_24, %c0_25] : memref<2x1x32xf32, #tpu.memory_space<vmem>>, vector<1x1x32xf32>
    %42 = vector.shape_cast %41 : vector<1x1x32xf32> to vector<1x32xf32>
    %43 = vector.broadcast %42 : vector<1x32xf32> to vector<8x32xf32>
    %44 = arith.addf %40, %43 : vector<8x32xf32>
    %cst_26 = arith.constant dense<0.000000e+00> : vector<8xf32>
    %45 = vector.multi_reduction <add>, %44, %cst_26 [1] : vector<8x32xf32> to vector<8xf32>
    %46 = vector.shape_cast %45 : vector<8xf32> to vector<8x1xf32>
    %cst_27 = arith.constant 3.200000e+01 : f32
    %47 = vector.broadcast %cst_27 : f32 to vector<8x1xf32>
    %48 = arith.divf %46, %47 : vector<8x1xf32>
    %49 = arith.mulf %44, %44 : vector<8x32xf32>
    %cst_28 = arith.constant dense<0.000000e+00> : vector<8xf32>
    %50 = vector.multi_reduction <add>, %49, %cst_28 [1] : vector<8x32xf32> to vector<8xf32>
    %51 = vector.shape_cast %50 : vector<8xf32> to vector<8x1xf32>
    %cst_29 = arith.constant 3.200000e+01 : f32
    %52 = vector.broadcast %cst_29 : f32 to vector<8x1xf32>
    %53 = arith.divf %51, %52 : vector<8x1xf32>
    %54 = arith.mulf %48, %48 : vector<8x1xf32>
    %55 = arith.subf %53, %54 : vector<8x1xf32>
    %cst_30 = arith.constant 0.000000e+00 : f32
    %56 = vector.broadcast %cst_30 : f32 to vector<8x1xf32>
    %57 = arith.maximumf %55, %56 : vector<8x1xf32>
    %58 = vector.broadcast %48 : vector<8x1xf32> to vector<8x32xf32>
    %59 = arith.subf %44, %58 : vector<8x32xf32>
    %cst_31 = arith.constant 9.99999974E-6 : f32
    %60 = vector.broadcast %cst_31 : f32 to vector<8x1xf32>
    %61 = arith.addf %57, %60 : vector<8x1xf32>
    %62 = math.rsqrt %61 : vector<8x1xf32>
    %63 = vector.broadcast %62 : vector<8x1xf32> to vector<8x32xf32>
    %64 = arith.mulf %59, %63 : vector<8x32xf32>
    %c1_32 = arith.constant 1 : index
    %c0_33 = arith.constant 0 : index
    %c0_34 = arith.constant 0 : index
    %65 = vector.load %arg4[%c1_32, %c0_33, %c0_34] : memref<2x1x32xf32, #tpu.memory_space<vmem>>, vector<1x1x32xf32>
    %66 = vector.shape_cast %65 : vector<1x1x32xf32> to vector<1x32xf32>
    %67 = vector.broadcast %66 : vector<1x32xf32> to vector<8x32xf32>
    %68 = arith.mulf %64, %67 : vector<8x32xf32>
    %c1_35 = arith.constant 1 : index
    %c0_36 = arith.constant 0 : index
    %c0_37 = arith.constant 0 : index
    %69 = vector.load %arg5[%c1_35, %c0_36, %c0_37] : memref<2x1x32xf32, #tpu.memory_space<vmem>>, vector<1x1x32xf32>
    %70 = vector.shape_cast %69 : vector<1x1x32xf32> to vector<1x32xf32>
    %71 = vector.broadcast %70 : vector<1x32xf32> to vector<8x32xf32>
    %72 = arith.addf %68, %71 : vector<8x32xf32>
    %cst_38 = arith.constant 0.000000e+00 : f32
    %73 = vector.broadcast %cst_38 : f32 to vector<8x32xf32>
    %74 = arith.maximumf %72, %73 : vector<8x32xf32>
    %c0_39 = arith.constant 0 : index
    %c0_40 = arith.constant 0 : index
    %75 = vector.load %arg6[%c0_39, %c0_40] : memref<32x128xf32, #tpu.memory_space<vmem>>, vector<32x128xf32>
    %cst_41 = arith.constant dense<0.000000e+00> : vector<8x128xf32>
    %76 = tpu.matmul %74, %75, %cst_41 {dimension_numbers = #tpu.dot_dimension_numbers<[1], [0], [0], [1], [0, 0, 1, 1], [], []>} : vector<8x32xf32>, vector<32x128xf32>, vector<8x128xf32> -> vector<8x128xf32>
    %c0_42 = arith.constant 0 : index
    %c0_43 = arith.constant 0 : index
    %77 = vector.load %arg7[%c0_42, %c0_43] : memref<1x128xf32, #tpu.memory_space<vmem>>, vector<1x128xf32>
    %78 = vector.broadcast %77 : vector<1x128xf32> to vector<8x128xf32>
    %79 = arith.addf %76, %78 : vector<8x128xf32>
    %c0_44 = arith.constant 0 : index
    %c0_45 = arith.constant 0 : index
    %80 = vector.load %arg8[%c0_44, %c0_45] : memref<8x128xf32, #tpu.memory_space<vmem>>, vector<8x128xf32>
    tpu.vector_store %arg8[%c0_44, %c0_45], %79 {strides = array<i32>} : memref<8x128xf32, #tpu.memory_space<vmem>>, vector<8x128xf32>,
    return
  }
  func.func @transform_0(%arg0: i32) -> (i32, i32) {
    %c0_i32 = arith.constant 0 : i32
    %c0_i32_0 = arith.constant 0 : i32
    return %arg0, %c0_i32 : i32, i32
  }
  func.func @transform_1(%arg0: i32) -> (i32, i32, i32) {
    %c0_i32 = arith.constant 0 : i32
    %c0_i32_0 = arith.constant 0 : i32
    %c0_i32_1 = arith.constant 0 : i32
    %c0_i32_2 = arith.constant 0 : i32
    return %c0_i32, %c0_i32_0, %c0_i32_1 : i32, i32, i32
  }
  func.func @transform_2(%arg0: i32) -> (i32, i32, i32) {
    %c0_i32 = arith.constant 0 : i32
    %c0_i32_0 = arith.constant 0 : i32
    %c0_i32_1 = arith.constant 0 : i32
    %c0_i32_2 = arith.constant 0 : i32
    return %c0_i32, %c0_i32_0, %c0_i32_1 : i32, i32, i32
  }
  func.func @transform_3(%arg0: i32) -> (i32, i32, i32) {
    %c0_i32 = arith.constant 0 : i32
    %c0_i32_0 = arith.constant 0 : i32
    %c0_i32_1 = arith.constant 0 : i32
    %c0_i32_2 = arith.constant 0 : i32
    return %c0_i32, %c0_i32_0, %c0_i32_1 : i32, i32, i32
  }
  func.func @transform_4(%arg0: i32) -> (i32, i32, i32) {
    %c0_i32 = arith.constant 0 : i32
    %c0_i32_0 = arith.constant 0 : i32
    %c0_i32_1 = arith.constant 0 : i32
    %c0_i32_2 = arith.constant 0 : i32
    return %c0_i32, %c0_i32_0, %c0_i32_1 : i32, i32, i32
  }
  func.func @transform_5(%arg0: i32) -> (i32, i32) {
    %c0_i32 = arith.constant 0 : i32
    %c0_i32_0 = arith.constant 0 : i32
    %c0_i32_1 = arith.constant 0 : i32
    return %c0_i32, %c0_i32_0 : i32, i32
  }
  func.func @transform_6(%arg0: i32) -> (i32, i32) {
    %c0_i32 = arith.constant 0 : i32
    %c0_i32_0 = arith.constant 0 : i32
    %c0_i32_1 = arith.constant 0 : i32
    return %c0_i32, %c0_i32_0 : i32, i32
  }
  func.func @transform_7(%arg0: i32) -> (i32, i32) {
    %c0_i32 = arith.constant 0 : i32
    %c0_i32_0 = arith.constant 0 : i32
    return %arg0, %c0_i32 : i32, i32
  }
}

</mosaic_0001>

<llo_original>
// kernel: tpu_custom_call.1
$region0: #{tpu_custom_call.1}
  #allocation0 [shape = 'u32[]', space=smem, size = 0x4, offset = 0x4, fixed_abs, tag = 'smem constant byte address 0x4 - core index']
  #allocation1 [shape = 'u32[144,128]{1,0:T(1,128)}', space=vmem, size = 0x12000, scoped, tag = 'internal scratch']
  %s0 = inlined_call_operand.hbm [shape: f32[8,32], index: 0, kind: input, shape index: {}]
  %s1 = inlined_call_operand.hbm [shape: f32[2,32,32], index: 1, kind: input, shape index: {}]
  %s2 = inlined_call_operand.vmem [shape: f32[2,1,32], index: 2, kind: input, shape index: {}]
  %s3 = inlined_call_operand.vmem [shape: f32[2,1,32], index: 3, kind: input, shape index: {}]
  %s4 = inlined_call_operand.vmem [shape: f32[2,1,32], index: 4, kind: input, shape index: {}]
  %s5 = inlined_call_operand.hbm [shape: f32[32,128], index: 5, kind: input, shape index: {}]
  %s6 = inlined_call_operand.vmem [shape: f32[1,128], index: 6, kind: input, shape index: {}]
  %s7 = inlined_call_operand.hbm [shape: f32[8,128], index: 7, kind: output, shape index: {}]
  %s8 = sld [smem:[#allocation0]]
  $region50: #{tpu_custom_call.1} parent=0
    _
  %s10 = ssub.s32 1, %s8
  %s11 = scalar_select 0, %s10, %s8
  $region1: #{tpu_custom_call.1} parent=0
    #allocation2 [shape = 'u8[4096]{0}', space=vmem, size = 0x1000, scoped, tag = 'input window, operand 0, single buffered']
    #allocation3 [shape = 's32[1]{0}', space=sflag, size = 0x4, scoped, tag = 'scoped memory for tpu_custom_call.1']
    #allocation4 [shape = 's32[1]{0}', space=sflag, size = 0x4, scoped, tag = 'scoped memory for tpu_custom_call.1']
    #allocation5 [shape = 'u8[32768]{0}', space=vmem, size = 0x8000, scoped, tag = 'input window, operand 1, single buffered']
    #allocation6 [shape = 's32[1]{0}', space=sflag, size = 0x4, scoped, tag = 'scoped memory for tpu_custom_call.1']
    #allocation7 [shape = 'u8[16384]{0}', space=vmem, size = 0x4000, scoped, tag = 'input window, operand 5, single buffered']
    #allocation8 [shape = 'u8[4096]{0}', space=vmem, size = 0x1000, scoped, tag = 'output window, operand 0, single buffered']
    %12 = vsyncpa [#allocation3], 0
    %13 = vsyncpa [#allocation6], 0
    %14 = vsyncpa [#allocation4], 0
    // Predicated region
    $region2: #{tpu_custom_call.1} parent=1 // pred_check
      _
    $region3: #{tpu_custom_call.1} parent=1 // pred_check_branch
      %16 = sbr.rel (0) target = $region5
    $region4: #{tpu_custom_call.1} parent=1 // pred_region
      %s18 = ssub.s32 128, 128
      %19 = vsyncadd [#allocation3], %s18
      %s21 = sshll.u32 [#allocation2], 4
      %s22 = int_to_ptr.vmem [resolvable:$true] %s21
      %24 = dma.hbm_to_vmem [thread:$0]  %s0, 128, %s22, [#allocation3]
    $region5: #{tpu_custom_call.1} parent=1 // pred_fallthru
      _
    // Predicated region
    $region6: #{tpu_custom_call.1} parent=1 // pred_check
      _
    $region7: #{tpu_custom_call.1} parent=1 // pred_check_branch
      %26 = sbr.rel (0) target = $region9
    $region8: #{tpu_custom_call.1} parent=1 // pred_region
      %s28 = ssub.s32 1024, 1024
      %29 = vsyncadd [#allocation6], %s28
      %s30 = sshll.u32 [#allocation5], 4
      %s31 = int_to_ptr.vmem [resolvable:$true] %s30
      %36 = dma.hbm_to_vmem [thread:$0]  %s1, 1024, %s31, [#allocation6], 128, 128, 8
    $region9: #{tpu_custom_call.1} parent=1 // pred_fallthru
      _
    // Predicated region
    $region10: #{tpu_custom_call.1} parent=1 // pred_check
      _
    $region11: #{tpu_custom_call.1} parent=1 // pred_check_branch
      %38 = sbr.rel (0) target = $region13
    $region12: #{tpu_custom_call.1} parent=1 // pred_region
      _
    $region13: #{tpu_custom_call.1} parent=1 // pred_fallthru
      _
    // Predicated region
    $region14: #{tpu_custom_call.1} parent=1 // pred_check
      _
    $region15: #{tpu_custom_call.1} parent=1 // pred_check_branch
      %40 = sbr.rel (0) target = $region17
    $region16: #{tpu_custom_call.1} parent=1 // pred_region
      _
    $region17: #{tpu_custom_call.1} parent=1 // pred_fallthru
      _
    // Predicated region
    $region18: #{tpu_custom_call.1} parent=1 // pred_check
      _
    $region19: #{tpu_custom_call.1} parent=1 // pred_check_branch
      %42 = sbr.rel (0) target = $region21
    $region20: #{tpu_custom_call.1} parent=1 // pred_region
      _
    $region21: #{tpu_custom_call.1} parent=1 // pred_fallthru
      _
    // Predicated region
    $region22: #{tpu_custom_call.1} parent=1 // pred_check
      _
    $region23: #{tpu_custom_call.1} parent=1 // pred_check_branch
      %44 = sbr.rel (0) target = $region25
    $region24: #{tpu_custom_call.1} parent=1 // pred_region
      %s46 = ssub.s32 512, 512
      %47 = vsyncadd [#allocation6], %s46
      %s48 = sshll.u32 [#allocation7], 4
      %s49 = int_to_ptr.vmem [resolvable:$true] %s48
      %54 = dma.hbm_to_vmem [thread:$0]  %s5, 512, %s49, [#allocation6], 128, 128, 8
    $region25: #{tpu_custom_call.1} parent=1 // pred_fallthru
      _
    // Predicated region
    $region26: #{tpu_custom_call.1} parent=1 // pred_check
      _
    $region27: #{tpu_custom_call.1} parent=1 // pred_check_branch
      %56 = sbr.rel (0) target = $region29
    $region28: #{tpu_custom_call.1} parent=1 // pred_region
      _
    $region29: #{tpu_custom_call.1} parent=1 // pred_fallthru
      _
    // Predicated region
    $region30: #{tpu_custom_call.1} parent=1 // pred_check
      _
    $region31: #{tpu_custom_call.1} parent=1 // pred_check_branch
      %58 = sbr.rel (0) target = $region33
    $region32: #{tpu_custom_call.1} parent=1 // pred_region
      %59 = dma.done [#allocation3], 128
    $region33: #{tpu_custom_call.1} parent=1 // pred_fallthru
      _
    // Predicated region
    $region34: #{tpu_custom_call.1} parent=1 // pred_check
      _
    $region35: #{tpu_custom_call.1} parent=1 // pred_check_branch
      %61 = sbr.rel (0) target = $region37
    $region36: #{tpu_custom_call.1} parent=1 // pred_region
      %62 = dma.done [#allocation6], 1024
    $region37: #{tpu_custom_call.1} parent=1 // pred_fallthru
      _
    // Predicated region
    $region38: #{tpu_custom_call.1} parent=1 // pred_check
      _
    $region39: #{tpu_custom_call.1} parent=1 // pred_check_branch
      %64 = sbr.rel (0) target = $region41
    $region40: #{tpu_custom_call.1} parent=1 // pred_region
      %65 = dma.done [#allocation6], 512
    $region41: #{tpu_custom_call.1} parent=1 // pred_fallthru
      _
    %v66 = vld [vmem:[#allocation2] sm:$0xff]
    %v67 = vld [vmem:[#allocation5] sm:$0xff]
    %v68 = vld [vmem:[#allocation5 + $0x8] sm:$0xff]
    %v69 = vld [vmem:[#allocation5 + $0x10] sm:$0xff]
    %v70 = vld [vmem:[#allocation5 + $0x18] sm:$0xff]
    %v71 = vld [vmem:[%s2] sm:$0x1]
    %v73 = vlaneseq
    %v74 = vshrl.u32 %v73, 7
    %v75 = vsub.s32 0, %v74
    %v76 = vrot.slane %v71, %v75
    %vm78 = vcmask 261120
    %v80 = vsel %vm78, %v66, 0
    %82 = vmatprep.subr.mxu0 0.0
    %83 = vmatpush1.msra.mxu0 0.0
    %84 = vmatprep.subr.mxu0 0.0
    %85 = vmatpush1.msra.mxu0 0.0
    %86 = vmatprep.subr.mxu0 0.0
    %87 = vmatpush1.msra.mxu0 0.0
    %88 = vmatprep.subr.mxu0 0.0
    %89 = vmatpush1.msra.mxu0 0.0
    %90 = vmatprep.subr.mxu0 0.0
    %91 = vmatpush1.msra.mxu0 0.0
    %92 = vmatprep.subr.mxu0 0.0
    %93 = vmatpush1.msra.mxu0 0.0
    %94 = vmatprep.subr.mxu0 0.0
    %95 = vmatpush1.msra.mxu0 0.0
    %96 = vmatprep.subr.mxu0 0.0
    %97 = vmatpush1.msra.mxu0 0.0
    %98 = vmatprep.subr.mxu0 0.0
    %99 = vmatpush1.msra.mxu0 0.0
    %100 = vmatprep.subr.mxu0 0.0
    %101 = vmatpush1.msra.mxu0 0.0
    %102 = vmatprep.subr.mxu0 0.0
    %103 = vmatpush1.msra.mxu0 0.0
    %104 = vmatprep.subr.mxu0 0.0
    %105 = vmatpush1.msra.mxu0 0.0
    %106 = vmatprep.subr.mxu0 0.0
    %107 = vmatpush1.msra.mxu0 %v70
    %108 = vmatprep.subr.mxu0 0.0
    %109 = vmatpush1.msra.mxu0 %v69
    %110 = vmatprep.subr.mxu0 0.0
    %111 = vmatpush1.msra.mxu0 %v68
    %112 = vmatprep.subr.mxu0 0.0
    %113 = vmatpush1.msra.mxu0 %v67
    %114 = vmatprep.subr.mxu0 0.0
    %115 = vmatpush2.msra.mxu0 0.0
    %116 = vmatprep.subr.mxu0 0.0
    %117 = vmatpush2.msra.mxu0 0.0
    %118 = vmatprep.subr.mxu0 0.0
    %119 = vmatpush2.msra.mxu0 0.0
    %120 = vmatprep.subr.mxu0 0.0
    %121 = vmatpush2.msra.mxu0 0.0
    %122 = vmatprep.subr.mxu0 0.0
    %123 = vmatpush2.msra.mxu0 0.0
    %124 = vmatprep.subr.mxu0 0.0
    %125 = vmatpush2.msra.mxu0 0.0
    %126 = vmatprep.subr.mxu0 0.0
    %127 = vmatpush2.msra.mxu0 0.0
    %128 = vmatprep.subr.mxu0 0.0
    %129 = vmatpush2.msra.mxu0 0.0
    %130 = vmatprep.subr.mxu0 0.0
    %131 = vmatpush2.msra.mxu0 0.0
    %132 = vmatprep.subr.mxu0 0.0
    %133 = vmatpush2.msra.mxu0 0.0
    %134 = vmatprep.subr.mxu0 0.0
    %135 = vmatpush2.msra.mxu0 0.0
    %136 = vmatprep.subr.mxu0 0.0
    %137 = vmatpush2.msra.mxu0 0.0
    %138 = vmatprep.subr.mxu0 0.0
    %139 = vmatpush2.msra.mxu0 0.0
    %140 = vmatprep.subr.mxu0 0.0
    %141 = vmatpush2.msra.mxu0 0.0
    %142 = vmatprep.subr.mxu0 0.0
    %143 = vmatpush2.msra.mxu0 0.0
    %144 = vmatprep.subr.mxu0 0.0
    %145 = vmatpush2.msra.mxu0 0.0
    %146 = vmatprep.mubr.f32.mxu0 0.0
    %147 = vmatmul.mubr.f32.gmra.mxu0 %v80
    %v148 = vpop.f32.mrf.mxu0
    %v149 = vadd.f32 %v76, %v148
    %v150 = vpop.f32.mrf.mxu0
    %151 = vdwg.mxu0
    %v152 = vsel %vm78, %v149, 0.0
    %153 = vadd.xlane.f32.xlu0 %v152
    %v154 = vpop.xlane.xlu0 %153
    %v155 = vrcp.pop 32.0
    %v156 = vmul.f32 %v154, %v155
    %v157 = vmul.f32 %v149, %v149
    %v158 = vsel %vm78, %v157, 0.0
    %159 = vadd.xlane.f32.xlu0 %v158
    %v160 = vpop.xlane.xlu0 %159
    %v161 = vmul.f32 %v160, %v155
    %v162 = vmul.f32 %v156, %v156
    %v163 = vsub.f32 %v161, %v162
    %v164 = vmax.f32 %v163, 0.0
    %v165 = vsub.f32 %v149, %v156
    %v166 = vadd.f32 %v164, 1e-05
    %v167 = vrsqrt.pop %v166
    %v168 = vmul.f32 %v165, %v167
    %v169 = vld [vmem:[%s3] sm:$0x1]
    %v171 = vlaneseq
    %v172 = vshrl.u32 %v171, 7
    %v173 = vsub.s32 0, %v172
    %v174 = vrot.slane %v169, %v173
    %v176 = vmul.f32 %v168, %v174
    %v177 = vld [vmem:[%s4] sm:$0x1]
    %v179 = vlaneseq
    %v180 = vshrl.u32 %v179, 7
    %v181 = vsub.s32 0, %v180
    %v182 = vrot.slane %v177, %v181
    %v184 = vadd.f32 %v176, %v182
    %v185 = vmax.f32 %v184, 0.0
    %s186 = scalar_lea.vmem [#allocation5], 32
    %v187 = vld [vmem:[%s186] sm:$0xff]
    %v188 = vld [vmem:[%s186 + $0x8] sm:$0xff]
    %v189 = vld [vmem:[%s186 + $0x10] sm:$0xff]
    %v190 = vld [vmem:[%s186 + $0x18] sm:$0xff]
    %s191 = scalar_lea.vmem %s2, 1
    %v192 = vld [vmem:[%s191] sm:$0x1]
    %v194 = vlaneseq
    %v195 = vshrl.u32 %v194, 7
    %v196 = vsub.s32 0, %v195
    %v197 = vrot.slane %v192, %v196
    %v200 = vsel %vm78, %v185, 0
    %202 = vmatprep.subr.mxu0 0.0
    %203 = vmatpush1.msra.mxu0 0.0
    %204 = vmatprep.subr.mxu0 0.0
    %205 = vmatpush1.msra.mxu0 0.0
    %206 = vmatprep.subr.mxu0 0.0
    %207 = vmatpush1.msra.mxu0 0.0
    %208 = vmatprep.subr.mxu0 0.0
    %209 = vmatpush1.msra.mxu0 0.0
    %210 = vmatprep.subr.mxu0 0.0
    %211 = vmatpush1.msra.mxu0 0.0
    %212 = vmatprep.subr.mxu0 0.0
    %213 = vmatpush1.msra.mxu0 0.0
    %214 = vmatprep.subr.mxu0 0.0
    %215 = vmatpush1.msra.mxu0 0.0
    %216 = vmatprep.subr.mxu0 0.0
    %217 = vmatpush1.msra.mxu0 0.0
    %218 = vmatprep.subr.mxu0 0.0
    %219 = vmatpush1.msra.mxu0 0.0
    %220 = vmatprep.subr.mxu0 0.0
    %221 = vmatpush1.msra.mxu0 0.0
    %222 = vmatprep.subr.mxu0 0.0
    %223 = vmatpush1.msra.mxu0 0.0
    %224 = vmatprep.subr.mxu0 0.0
    %225 = vmatpush1.msra.mxu0 0.0
    %226 = vmatprep.subr.mxu0 0.0
    %227 = vmatpush1.msra.mxu0 %v190
    %228 = vmatprep.subr.mxu0 0.0
    %229 = vmatpush1.msra.mxu0 %v189
    %230 = vmatprep.subr.mxu0 0.0
    %231 = vmatpush1.msra.mxu0 %v188
    %232 = vmatprep.subr.mxu0 0.0
    %233 = vmatpush1.msra.mxu0 %v187
    %234 = vmatprep.subr.mxu0 0.0
    %235 = vmatpush2.msra.mxu0 0.0
    %236 = vmatprep.subr.mxu0 0.0
    %237 = vmatpush2.msra.mxu0 0.0
    %238 = vmatprep.subr.mxu0 0.0
    %239 = vmatpush2.msra.mxu0 0.0
    %240 = vmatprep.subr.mxu0 0.0
    %241 = vmatpush2.msra.mxu0 0.0
    %242 = vmatprep.subr.mxu0 0.0
    %243 = vmatpush2.msra.mxu0 0.0
    %244 = vmatprep.subr.mxu0 0.0
    %245 = vmatpush2.msra.mxu0 0.0
    %246 = vmatprep.subr.mxu0 0.0
    %247 = vmatpush2.msra.mxu0 0.0
    %248 = vmatprep.subr.mxu0 0.0
    %249 = vmatpush2.msra.mxu0 0.0
    %250 = vmatprep.subr.mxu0 0.0
    %251 = vmatpush2.msra.mxu0 0.0
    %252 = vmatprep.subr.mxu0 0.0
    %253 = vmatpush2.msra.mxu0 0.0
    %254 = vmatprep.subr.mxu0 0.0
    %255 = vmatpush2.msra.mxu0 0.0
    %256 = vmatprep.subr.mxu0 0.0
    %257 = vmatpush2.msra.mxu0 0.0
    %258 = vmatprep.subr.mxu0 0.0
    %259 = vmatpush2.msra.mxu0 0.0
    %260 = vmatprep.subr.mxu0 0.0
    %261 = vmatpush2.msra.mxu0 0.0
    %262 = vmatprep.subr.mxu0 0.0
    %263 = vmatpush2.msra.mxu0 0.0
    %264 = vmatprep.subr.mxu0 0.0
    %265 = vmatpush2.msra.mxu0 0.0
    %266 = vmatprep.mubr.f32.mxu0 0.0
    %267 = vmatmul.mubr.f32.gmra.mxu0 %v200
    %v268 = vpop.f32.mrf.mxu0
    %v269 = vadd.f32 %v197, %v268
    %v270 = vpop.f32.mrf.mxu0
    %271 = vdwg.mxu0
    %v272 = vsel %vm78, %v269, 0.0
    %273 = vadd.xlane.f32.xlu0 %v272
    %v274 = vpop.xlane.xlu0 %273
    %v275 = vmul.f32 %v274, %v155
    %v276 = vmul.f32 %v269, %v269
    %v277 = vsel %vm78, %v276, 0.0
    %278 = vadd.xlane.f32.xlu0 %v277
    %v279 = vpop.xlane.xlu0 %278
    %v280 = vmul.f32 %v279, %v155
    %v281 = vmul.f32 %v275, %v275
    %v282 = vsub.f32 %v280, %v281
    %v283 = vmax.f32 %v282, 0.0
    %v284 = vsub.f32 %v269, %v275
    %v285 = vadd.f32 %v283, 1e-05
    %v286 = vrsqrt.pop %v285
    %v287 = vmul.f32 %v284, %v286
    %s288 = scalar_lea.vmem %s3, 1
    %v289 = vld [vmem:[%s288] sm:$0x1]
    %v291 = vlaneseq
    %v292 = vshrl.u32 %v291, 7
    %v293 = vsub.s32 0, %v292
    %v294 = vrot.slane %v289, %v293
    %v296 = vmul.f32 %v287, %v294
    %s297 = scalar_lea.vmem %s4, 1
    %v298 = vld [vmem:[%s297] sm:$0x1]
    %v300 = vlaneseq
    %v301 = vshrl.u32 %v300, 7
    %v302 = vsub.s32 0, %v301
    %v303 = vrot.slane %v298, %v302
    %v305 = vadd.f32 %v296, %v303
    %v306 = vmax.f32 %v305, 0.0
    %v307 = vld [vmem:[#allocation7] sm:$0xff]
    %v308 = vld [vmem:[#allocation7 + $0x8] sm:$0xff]
    %v309 = vld [vmem:[#allocation7 + $0x10] sm:$0xff]
    %v310 = vld [vmem:[#allocation7 + $0x18] sm:$0xff]
    %v311 = vld [vmem:[%s6] sm:$0x1]
    %v313 = vlaneseq
    %v314 = vshrl.u32 %v313, 7
    %v315 = vsub.s32 0, %v314
    %v316 = vrot.slane %v311, %v315
    %v319 = vsel %vm78, %v306, 0
    %321 = vmatprep.subr.mxu0 0.0
    %322 = vmatpush1.msra.mxu0 0.0
    %323 = vmatprep.subr.mxu0 0.0
    %324 = vmatpush1.msra.mxu0 0.0
    %325 = vmatprep.subr.mxu0 0.0
    %326 = vmatpush1.msra.mxu0 0.0
    %327 = vmatprep.subr.mxu0 0.0
    %328 = vmatpush1.msra.mxu0 0.0
    %329 = vmatprep.subr.mxu0 0.0
    %330 = vmatpush1.msra.mxu0 0.0
    %331 = vmatprep.subr.mxu0 0.0
    %332 = vmatpush1.msra.mxu0 0.0
    %333 = vmatprep.subr.mxu0 0.0
    %334 = vmatpush1.msra.mxu0 0.0
    %335 = vmatprep.subr.mxu0 0.0
    %336 = vmatpush1.msra.mxu0 0.0
    %337 = vmatprep.subr.mxu0 0.0
    %338 = vmatpush1.msra.mxu0 0.0
    %339 = vmatprep.subr.mxu0 0.0
    %340 = vmatpush1.msra.mxu0 0.0
    %341 = vmatprep.subr.mxu0 0.0
    %342 = vmatpush1.msra.mxu0 0.0
    %343 = vmatprep.subr.mxu0 0.0
    %344 = vmatpush1.msra.mxu0 0.0
    %345 = vmatprep.subr.mxu0 0.0
    %346 = vmatpush1.msra.mxu0 %v310
    %347 = vmatprep.subr.mxu0 0.0
    %348 = vmatpush1.msra.mxu0 %v309
    %349 = vmatprep.subr.mxu0 0.0
    %350 = vmatpush1.msra.mxu0 %v308
    %351 = vmatprep.subr.mxu0 0.0
    %352 = vmatpush1.msra.mxu0 %v307
    %353 = vmatprep.subr.mxu0 0.0
    %354 = vmatpush2.msra.mxu0 0.0
    %355 = vmatprep.subr.mxu0 0.0
    %356 = vmatpush2.msra.mxu0 0.0
    %357 = vmatprep.subr.mxu0 0.0
    %358 = vmatpush2.msra.mxu0 0.0
    %359 = vmatprep.subr.mxu0 0.0
    %360 = vmatpush2.msra.mxu0 0.0
    %361 = vmatprep.subr.mxu0 0.0
    %362 = vmatpush2.msra.mxu0 0.0
    %363 = vmatprep.subr.mxu0 0.0
    %364 = vmatpush2.msra.mxu0 0.0
    %365 = vmatprep.subr.mxu0 0.0
    %366 = vmatpush2.msra.mxu0 0.0
    %367 = vmatprep.subr.mxu0 0.0
    %368 = vmatpush2.msra.mxu0 0.0
    %369 = vmatprep.subr.mxu0 0.0
    %370 = vmatpush2.msra.mxu0 0.0
    %371 = vmatprep.subr.mxu0 0.0
    %372 = vmatpush2.msra.mxu0 0.0
    %373 = vmatprep.subr.mxu0 0.0
    %374 = vmatpush2.msra.mxu0 0.0
    %375 = vmatprep.subr.mxu0 0.0
    %376 = vmatpush2.msra.mxu0 0.0
    %377 = vmatprep.subr.mxu0 0.0
    %378 = vmatpush2.msra.mxu0 0.0
    %379 = vmatprep.subr.mxu0 0.0
    %380 = vmatpush2.msra.mxu0 0.0
    %381 = vmatprep.subr.mxu0 0.0
    %382 = vmatpush2.msra.mxu0 0.0
    %383 = vmatprep.subr.mxu0 0.0
    %384 = vmatpush2.msra.mxu0 0.0
    %385 = vmatprep.mubr.f32.mxu0 0.0
    %386 = vmatmul.mubr.f32.gmra.mxu0 %v319
    %v387 = vpop.f32.mrf.mxu0
    %v388 = vadd.f32 %v316, %v387
    %v389 = vpop.f32.mrf.mxu0
    %390 = vdwg.mxu0
    %391 = vst [vmem:[#allocation8] sm:$0xff] %v388
    // Predicated region
    $region42: #{tpu_custom_call.1} parent=1 // pred_check
      _
    $region43: #{tpu_custom_call.1} parent=1 // pred_check_branch
      %393 = sbr.rel (0) target = $region45
    $region44: #{tpu_custom_call.1} parent=1 // pred_region
      %s395 = ssub.s32 128, 128
      %396 = vsyncadd [#allocation4], %s395
      %s398 = sshll.u32 [#allocation8], 4
      %s399 = int_to_ptr.vmem [resolvable:$true] %s398
      %401 = dma.vmem_to_hbm [thread:$0]  %s399, 128, %s7, [#allocation4]
    $region45: #{tpu_custom_call.1} parent=1 // pred_fallthru
      _
    // Predicated region
    $region46: #{tpu_custom_call.1} parent=1 // pred_check
      _
    $region47: #{tpu_custom_call.1} parent=1 // pred_check_branch
      %403 = sbr.rel (0) target = $region49
    $region48: #{tpu_custom_call.1} parent=1 // pred_region
      %404 = dma.done [#allocation4], 128
    $region49: #{tpu_custom_call.1} parent=1 // pred_fallthru
      _
    %405 = vsyncpa [#allocation3], 1
    %406 = vsyncpa [#allocation6], 1
    %407 = vsyncpa [#allocation4], 1

</llo_original>
